<compile_context>
chip_gen: v7x
topology: tpu7x:2x2x1
jax: 0.10.0
libtpu: 0.0.40
codegen_flags: <defaults>
</compile_context>

<pallas_src>
import functools

import jax
import jax.numpy as jnp
import numpy as np
from jax.experimental import pallas as pl
from jax.experimental.pallas import tpu as pltpu


# ----------------------------- in-kernel helpers -----------------------------

def _softmax_last(x):
    """Softmax over the last (lane) axis.  Reciprocal on the otherwise-idle
    EUP slot (approx) + one Newton refinement step to stay within 1e-5."""
    m = jnp.max(x, axis=-1, keepdims=True)
    e = jnp.exp(x - m)
    d = jnp.sum(e, axis=-1, keepdims=True)
    r = pl.reciprocal(d, approx=True)
    r = r * (2.0 - d * r)          # one Newton step -> ~f32 accuracy
    return e * r


def _scores_bqs(hq, enc_bsh):
    """(B,1,H) x (B,S,H) -> (B,1,S): single batched contraction over H on the
    MXU, landing directly in the lane-dense output layout (no transpose)."""
    return jnp.einsum("bqh,bsh->bqs", hq, enc_bsh,
                      preferred_element_type=jnp.float32)


# --------------------------------- kernels -----------------------------------

def dot_attn_kernel(hidden_ref, enc_ref, out_ref):
    enc_bsh = pltpu.einshape("sbh->bsh", enc_ref[...])             # (B,S,H)
    scores = _scores_bqs(hidden_ref[...][:, None, :], enc_bsh)     # (B,1,S)
    out_ref[...] = _softmax_last(scores)


def general_attn_kernel(hidden_ref, enc_ref, w_ref, b_ref, out_ref):
    h = hidden_ref[...]                                            # (B,H)
    enc_bsh = pltpu.einshape("sbh->bsh", enc_ref[...])             # (B,S,H)
    # Hoist the linear layer onto hidden (S x fewer MXU flops, no energy tensor):
    #   sum_h h * (enc @ W^T + b)  ==  (h @ W) . enc  +  h . b
    hw = jnp.dot(h, w_ref[...], preferred_element_type=jnp.float32)    # (B,H)
    hb = jnp.sum(h * b_ref[...], axis=-1, keepdims=True)               # (B,1)
    scores = _scores_bqs(hw[:, None, :], enc_bsh) + hb[:, :, None]     # (B,1,S)
    out_ref[...] = _softmax_last(scores)


def concat_attn_kernel(hidden_ref, enc_ref, w1t_ref, w2t_ref, b_ref, v_ref,
                       out_ref):
    h = hidden_ref[...]                                            # (B,H)
    bsz = h.shape[0]
    enc_bsh = pltpu.einshape("sbh->bsh", enc_ref[...])             # (B,S,H)
    # concat(hidden_expand, enc) @ W^T == hidden @ W1^T + enc @ W2^T
    # with W = [W1 | W2] pre-split and pre-transposed once at setup.
    h_part = jnp.dot(h, w1t_ref[...], preferred_element_type=jnp.float32)  # (B,H)
    w2t_b = jnp.broadcast_to(w2t_ref[...], (bsz,) + w2t_ref.shape)         # (B,H,H)
    e_part = jnp.einsum("bsh,bhk->bsk", enc_bsh, w2t_b,
                        preferred_element_type=jnp.float32)                # (B,S,H)
    energy = jnp.tanh(e_part + h_part[:, None, :] + b_ref[...])            # (B,S,H)
    v_b = jnp.broadcast_to(v_ref[...], (bsz, 1, v_ref.shape[-1]))          # (B,1,H)
    out_ref[...] = _softmax_last(_scores_bqs(v_b, energy))                 # (B,1,S)


# --------------------------------- wrapper ------------------------------------

def prep_params(method, raw):
    """One-time parameter preprocessing (split/transpose/reshape) so that no
    per-call XLA slice/reshape ops sit between the host and the pallas_call."""
    if method == "general":
        return {"W": jnp.asarray(raw["W"]),
                "b2": jnp.asarray(raw["b"]).reshape(1, -1)}
    if method == "concat":
        W = jnp.asarray(raw["W"])
        H = W.shape[0]
        return {"W1T": W[:, :H].T,                      # (H, H)
                "W2T": W[:, H:].T,                      # (H, H)
                "b3": jnp.asarray(raw["b"]).reshape(1, 1, -1),
                "v3": jnp.asarray(raw["v"]).reshape(1, 1, -1)}
    return {}


@functools.partial(jax.jit, static_argnums=0)
def attn_forward(method, hidden, encoder_outputs, params):
    """hidden: (1, B, H) f32, encoder_outputs: (S, B, H) f32 -> (B, 1, S) f32."""
    S, B, H = encoder_outputs.shape
    h2d = hidden[0]                                    # (B,H): metadata-only squeeze
    vmem = lambda: pl.BlockSpec(memory_space=pltpu.MemorySpace.VMEM)
    out_shape = jax.ShapeDtypeStruct((B, 1, S), jnp.float32)

    if method == "dot":
        kern, args = dot_attn_kernel, (h2d, encoder_outputs)
        flops = 2 * B * S * H
        transcendentals = B * S
    elif method == "general":
        kern = general_attn_kernel
        args = (h2d, encoder_outputs, params["W"], params["b2"])
        flops = 2 * B * H * H + 2 * B * H + 2 * B * S * H
        transcendentals = B * S
    elif method == "concat":
        kern = concat_attn_kernel
        args = (h2d, encoder_outputs, params["W1T"], params["W2T"],
                params["b3"], params["v3"])
        flops = 2 * B * H * H + 2 * B * S * H * H + 2 * B * S * H
        transcendentals = B * S * H + B * S
    else:
        raise ValueError(method, "is not an appropriate attention method.")

    bytes_accessed = 4 * (sum(int(np.prod(a.shape)) for a in args) + B * S)
    cost = pl.CostEstimate(flops=int(flops),
                           transcendentals=int(transcendentals),
                           bytes_accessed=int(bytes_accessed))

    # Single VMEM-resident block, no grid: at these shapes a grid is a serial
    # loop and pure overhead.  (If S/B/H grow, add a leading "parallel" grid
    # axis + BlockSpec tiling before VMEM limits bite, esp. on v7x.)
    return pl.pallas_call(
        kern,
        out_shape=out_shape,
        in_specs=[vmem() for _ in args],
        out_specs=vmem(),
        cost_estimate=cost,
    )(*args)


# ------------------------------ pure-JAX reference -----------------------------

def ref_forward(method, hidden, enc, raw):
    if method == "dot":
        scores = jnp.sum(hidden * enc, axis=2)
    elif method == "general":
        energy = enc @ raw["W"].T + raw["b"]
        scores = jnp.sum(hidden * energy, axis=2)
    else:
        hexp = jnp.broadcast_to(hidden, enc.shape)
        cat = jnp.concatenate([hexp, enc], axis=2)
        energy = jnp.tanh(cat @ raw["W"].T + raw["b"])
        scores = jnp.sum(raw["v"] * energy, axis=2)
    return jax.nn.softmax(scores.T, axis=1)[:, None, :]


# ----------------------------------- main --------------------------------------

if __name__ == "__main__":
    S, B, H = 8, 2, 32
    key = jax.random.PRNGKey(0)
    k_h, k_e, k_wg, k_bg, k_wc, k_bc, k_v = jax.random.split(key, 7)

    hidden = jax.random.normal(k_h, (1, B, H), dtype=jnp.float32)
    encoder_outputs = jax.random.normal(k_e, (S, B, H), dtype=jnp.float32)

    # Deterministic parameter init (mirrors the nn.Linear shapes in __init__).
    lim_g = 1.0 / np.sqrt(H)
    lim_c = 1.0 / np.sqrt(2 * H)
    raw_params = {
        "general": {
            "W": jax.random.uniform(k_wg, (H, H), jnp.float32, -lim_g, lim_g),
            "b": jax.random.uniform(k_bg, (H,), jnp.float32, -lim_g, lim_g),
        },
        "concat": {
            "W": jax.random.uniform(k_wc, (H, 2 * H), jnp.float32, -lim_c, lim_c),
            "b": jax.random.uniform(k_bc, (H,), jnp.float32, -lim_c, lim_c),
            "v": jax.random.normal(k_v, (H,), dtype=jnp.float32),
        },
        "dot": {},
    }

    for method in ("dot", "general", "concat"):
        prepped = prep_params(method, raw_params[method])   # one-time setup
        out = attn_forward(method, hidden, encoder_outputs, prepped)
        out = jax.block_until_ready(out)
        ref = ref_forward(method, hidden, encoder_outputs, raw_params[method])
        assert out.shape == (B, 1, S), (method, out.shape)
        np.testing.assert_allclose(np.asarray(out), np.asarray(ref),
                                   rtol=1e-5, atol=1e-5)

    print("KERNEL_OK")
</pallas_src>

<mosaic_0001>
module attributes {stable_mosaic.version = 11 : i64} {
  func.func @dot_attn_kernel(%arg0: memref<2x32xf32, #tpu.memory_space<vmem>>, %arg1: memref<8x2x32xf32, #tpu.memory_space<vmem>>, %arg2: memref<2x1x8xf32, #tpu.memory_space<vmem>>) attributes {dimension_semantics = [], scalar_prefetch = 0 : i64, scratch_operands = 0 : i64, tpu.core_type = #tpu.core_type<tc>} {
    %c0 = arith.constant 0 : index
    %c0_0 = arith.constant 0 : index
    %c0_1 = arith.constant 0 : index
    %0 = vector.load %arg1[%c0, %c0_0, %c0_1] : memref<8x2x32xf32, #tpu.memory_space<vmem>>, vector<8x2x32xf32>
    %1 = tpu.transpose %0, [1, 0, 2] : vector<8x2x32xf32> -> vector<2x8x32xf32>
    %c0_2 = arith.constant 0 : index
    %c0_3 = arith.constant 0 : index
    %2 = vector.load %arg0[%c0_2, %c0_3] : memref<2x32xf32, #tpu.memory_space<vmem>>, vector<2x32xf32>
    %3 = vector.shape_cast %2 : vector<2x32xf32> to vector<2x1x32xf32>
    "tpu.trace_start"() <{level = 10 : i32, message = "bqh,bsh->bqs"}> : () -> ()
    %cst = arith.constant dense<0.000000e+00> : vector<2x1x8xf32>
    %4 = tpu.matmul %3, %1, %cst {dimension_numbers = #tpu.dot_dimension_numbers<[2], [2], [1], [1], [0, 0, 0, 1, 1, 1], [0], [0]>} : vector<2x1x32xf32>, vector<2x8x32xf32>, vector<2x1x8xf32> -> vector<2x1x8xf32>
    "tpu.trace_stop"() : () -> ()
    %cst_4 = arith.constant dense<0xFF800000> : vector<2x1xf32>
    %5 = vector.multi_reduction <maximumf>, %4, %cst_4 [2] : vector<2x1x8xf32> to vector<2x1xf32>
    %6 = vector.shape_cast %5 : vector<2x1xf32> to vector<2x1x1xf32>
    %7 = vector.broadcast %6 : vector<2x1x1xf32> to vector<2x1x8xf32>
    %8 = arith.subf %4, %7 : vector<2x1x8xf32>
    %9 = math.exp %8 : vector<2x1x8xf32>
    %cst_5 = arith.constant dense<0.000000e+00> : vector<2x1xf32>
    %10 = vector.multi_reduction <add>, %9, %cst_5 [2] : vector<2x1x8xf32> to vector<2x1xf32>
    %11 = vector.shape_cast %10 : vector<2x1xf32> to vector<2x1x1xf32>
    %12 = tpu.reciprocal %11 {approx = true} : vector<2x1x1xf32> -> vector<2x1x1xf32>
    %13 = arith.mulf %11, %12 : vector<2x1x1xf32>
    %cst_6 = arith.constant 2.000000e+00 : f32
    %14 = vector.broadcast %cst_6 : f32 to vector<2x1x1xf32>
    %15 = arith.subf %14, %13 : vector<2x1x1xf32>
    %16 = arith.mulf %12, %15 : vector<2x1x1xf32>
    %17 = vector.broadcast %16 : vector<2x1x1xf32> to vector<2x1x8xf32>
    %18 = arith.mulf %9, %17 : vector<2x1x8xf32>
    %c0_7 = arith.constant 0 : index
    %c0_8 = arith.constant 0 : index
    %c0_9 = arith.constant 0 : index
    %19 = vector.load %arg2[%c0_7, %c0_8, %c0_9] : memref<2x1x8xf32, #tpu.memory_space<vmem>>, vector<2x1x8xf32>
    tpu.vector_store %arg2[%c0_7, %c0_8, %c0_9], %18 {strides = array<i32>} : memref<2x1x8xf32, #tpu.memory_space<vmem>>, vector<2x1x8xf32>,
    return
  }
}

</mosaic_0001>

<llo_original>
// kernel: attn_forward.1
$region0: #{attn_forward.1}
  #allocation0 [shape = 'u32[]', space=smem, size = 0x4, offset = 0x4, fixed_abs, tag = 'smem constant byte address 0x4 - core index']
  #allocation1 [shape = 'u32[144,128]{1,0:T(1,128)}', space=vmem, size = 0x12000, scoped, tag = 'internal scratch']
  %s0 = inlined_call_operand.vmem [shape: f32[2,32], index: 0, kind: input, shape index: {}]
  %s1 = inlined_call_operand.hbm [shape: f32[8,2,32], index: 1, kind: input, shape index: {}]
  %s2 = inlined_call_operand.hbm [shape: f32[2,1,8], index: 2, kind: output, shape index: {}]
  %s3 = sld [smem:[#allocation0]]
  $region22: #{attn_forward.1} parent=0
    _
  %s5 = ssub.s32 1, %s3
  %s6 = scalar_select 0, %s5, %s3
  $region1: #{attn_forward.1} parent=0
    #allocation2 [shape = 'u8[8192]{0}', space=vmem, size = 0x2000, scoped, tag = 'input window, operand 1, single buffered']
    #allocation3 [shape = 's32[1]{0}', space=sflag, size = 0x4, scoped, tag = 'scoped memory for attn_forward.1']
    #allocation4 [shape = 's32[1]{0}', space=sflag, size = 0x4, scoped, tag = 'scoped memory for attn_forward.1']
    #allocation5 [shape = 'u8[1024]{0}', space=vmem, size = 0x400, scoped, tag = 'output window, operand 0, single buffered']
    %7 = vsyncpa [#allocation3], 0
    %8 = vsyncpa [#allocation4], 0
    // Predicated region
    $region2: #{attn_forward.1} parent=1 // pred_check
      _
    $region3: #{attn_forward.1} parent=1 // pred_check_branch
      %10 = sbr.rel (0) target = $region5
    $region4: #{attn_forward.1} parent=1 // pred_region
      _
    $region5: #{attn_forward.1} parent=1 // pred_fallthru
      _
    // Predicated region
    $region6: #{attn_forward.1} parent=1 // pred_check
      _
    $region7: #{attn_forward.1} parent=1 // pred_check_branch
      %12 = sbr.rel (0) target = $region9
    $region8: #{attn_forward.1} parent=1 // pred_region
      %s14 = ssub.s32 256, 256
      %15 = vsyncadd [#allocation3], %s14
      %s16 = sshll.u32 [#allocation2], 4
      %s17 = int_to_ptr.vmem [resolvable:$true] %s16
      %22 = dma.hbm_to_vmem [thread:$0]  %s1, 256, %s17, [#allocation3], 32, 32, 2
    $region9: #{attn_forward.1} parent=1 // pred_fallthru
      _
    // Predicated region
    $region10: #{attn_forward.1} parent=1 // pred_check
      _
    $region11: #{attn_forward.1} parent=1 // pred_check_branch
      %24 = sbr.rel (0) target = $region13
    $region12: #{attn_forward.1} parent=1 // pred_region
      %25 = dma.done [#allocation3], 256
    $region13: #{attn_forward.1} parent=1 // pred_fallthru
      _
    %v26 = vld [vmem:[#allocation2] sm:$0x3]
    %v27 = vld [vmem:[#allocation2 + $0x2] sm:$0x3]
    %v28 = vld [vmem:[#allocation2 + $0x4] sm:$0x3]
    %v29 = vld [vmem:[#allocation2 + $0x6] sm:$0x3]
    %v30 = vld [vmem:[#allocation2 + $0x8] sm:$0x3]
    %v31 = vld [vmem:[#allocation2 + $0xa] sm:$0x3]
    %v32 = vld [vmem:[#allocation2 + $0xc] sm:$0x3]
    %v33 = vld [vmem:[#allocation2 + $0xe] sm:$0x3]
    %v34 = vcombine.low %v26, %v28
    %v36 = vunpack.c.l.s4 1983009808
    %v37 = vunpack.c.0.s8 %v36
    %v38 = vlaneseq
    %v39 = vshrl.u32 %v38, 7
    %v40 = vsub.s32 %v37, %v39
    %v41 = vrot.slane %v34, %v40
    %v42 = vcombine.low %v27, %v29
    %v44 = vunpack.c.l.s4 1983009808
    %v45 = vunpack.c.0.s8 %v44
    %v46 = vlaneseq
    %v47 = vshrl.u32 %v46, 7
    %v48 = vsub.s32 %v45, %v47
    %v49 = vrot.slane %v42, %v48
    %v50 = vcombine.low %v30, %v32
    %v52 = vunpack.c.l.s4 1983009808
    %v53 = vunpack.c.0.s8 %v52
    %v54 = vlaneseq
    %v55 = vshrl.u32 %v54, 7
    %v56 = vsub.s32 %v53, %v55
    %v57 = vrot.slane %v50, %v56
    %v58 = vcombine.low %v31, %v33
    %v60 = vunpack.c.l.s4 1983009808
    %v61 = vunpack.c.0.s8 %v60
    %v62 = vlaneseq
    %v63 = vshrl.u32 %v62, 7
    %v64 = vsub.s32 %v61, %v63
    %v65 = vrot.slane %v58, %v64
    %v66 = vcombine.low %v41, %v49
    %v68 = vunpack.c.l.s4 1934713408
    %v69 = vunpack.c.0.s8 %v68
    %v70 = vlaneseq
    %v71 = vshrl.u32 %v70, 7
    %v72 = vsub.s32 %v69, %v71
    %v73 = vrot.slane %v66, %v72
    %v74 = vcombine.low %v57, %v65
    %v76 = vunpack.c.l.s4 1934713408
    %v77 = vunpack.c.0.s8 %v76
    %v78 = vlaneseq
    %v79 = vshrl.u32 %v78, 7
    %v80 = vsub.s32 %v77, %v79
    %v81 = vrot.slane %v74, %v80
    %v82 = vcombine.low %v73, %v81
    %v83 = vcombine.high %v73, %v81
    %v84 = vld [vmem:[%s0] sm:$0x3]
    %v87 = vunpack.c.l.s4 1966171168
    %v88 = vunpack.c.0.s8 %v87
    %v89 = vlaneseq
    %v90 = vshrl.u32 %v89, 7
    %v91 = vsub.s32 %v88, %v90
    %v92 = vrot.slane %v84, %v91
    %v93 = vcombine.high %v92, %v92
    %v95 = vunpack.c.l.s4 1966171168
    %v96 = vunpack.c.0.s8 %v95
    %v97 = vlaneseq
    %v98 = vshrl.u32 %v97, 7
    %v99 = vsub.s32 %v96, %v98
    %v100 = vrot.slane %v92, %v99
    %v102 = vunpack.c.l.s4 1966171168
    %v103 = vunpack.c.0.s8 %v102
    %v104 = vlaneseq
    %v105 = vshrl.u32 %v104, 7
    %v106 = vsub.s32 %v103, %v105
    %v107 = vrot.slane %v93, %v106
    %vm108 = vcmask 261120
    %v109 = vsel %vm108, %v100, 0
    %v112 = vsel %vm108, %v82, 0
    %114 = vmatprep.subr.mxu0 0.0
    %115 = vmatpush1.xpose.msra.mxu0 %v112
    %116 = vmatprep.subr.mxu0 0.0
    %117 = vmatpush1.xpose.msra.mxu0 0.0
    %118 = vmatprep.subr.mxu0 0.0
    %119 = vmatpush1.xpose.msra.mxu0 0.0
    %120 = vmatprep.subr.mxu0 0.0
    %121 = vmatpush1.xpose.msra.mxu0 0.0
    %122 = vmatprep.subr.mxu0 0.0
    %123 = vmatpush1.xpose.msra.mxu0 0.0
    %124 = vmatprep.subr.mxu0 0.0
    %125 = vmatpush1.xpose.msra.mxu0 0.0
    %126 = vmatprep.subr.mxu0 0.0
    %127 = vmatpush1.xpose.msra.mxu0 0.0
    %128 = vmatprep.subr.mxu0 0.0
    %129 = vmatpush1.xpose.msra.mxu0 0.0
    %130 = vmatprep.subr.mxu0 0.0
    %131 = vmatpush1.xpose.msra.mxu0 0.0
    %132 = vmatprep.subr.mxu0 0.0
    %133 = vmatpush1.xpose.msra.mxu0 0.0
    %134 = vmatprep.subr.mxu0 0.0
    %135 = vmatpush1.xpose.msra.mxu0 0.0
    %136 = vmatprep.subr.mxu0 0.0
    %137 = vmatpush1.xpose.msra.mxu0 0.0
    %138 = vmatprep.subr.mxu0 0.0
    %139 = vmatpush1.xpose.msra.mxu0 0.0
    %140 = vmatprep.subr.mxu0 0.0
    %141 = vmatpush1.xpose.msra.mxu0 0.0
    %142 = vmatprep.subr.mxu0 0.0
    %143 = vmatpush1.xpose.msra.mxu0 0.0
    %144 = vmatprep.subr.mxu0 0.0
    %145 = vmatpush1.xpose.msra.mxu0 0.0
    %146 = vmatprep.subr.mxu0 0.0
    %147 = vmatpush1.xpose.msra.mxu0 0.0
    %148 = vmatprep.subr.mxu0 0.0
    %149 = vmatpush1.xpose.msra.mxu0 0.0
    %150 = vmatprep.subr.mxu0 0.0
    %151 = vmatpush1.xpose.msra.mxu0 0.0
    %152 = vmatprep.subr.mxu0 0.0
    %153 = vmatpush1.xpose.msra.mxu0 0.0
    %154 = vmatprep.subr.mxu0 0.0
    %155 = vmatpush1.xpose.msra.mxu0 0.0
    %156 = vmatprep.subr.mxu0 0.0
    %157 = vmatpush1.xpose.msra.mxu0 0.0
    %158 = vmatprep.subr.mxu0 0.0
    %159 = vmatpush1.xpose.msra.mxu0 0.0
    %160 = vmatprep.subr.mxu0 0.0
    %161 = vmatpush1.xpose.msra.mxu0 0.0
    %162 = vmatprep.subr.mxu0 0.0
    %163 = vmatpush1.xpose.msra.mxu0 0.0
    %164 = vmatprep.subr.mxu0 0.0
    %165 = vmatpush1.xpose.msra.mxu0 0.0
    %166 = vmatprep.subr.mxu0 0.0
    %167 = vmatpush1.xpose.msra.mxu0 0.0
    %168 = vmatprep.subr.mxu0 0.0
    %169 = vmatpush1.xpose.msra.mxu0 0.0
    %170 = vmatprep.subr.mxu0 0.0
    %171 = vmatpush1.xpose.msra.mxu0 0.0
    %172 = vmatprep.subr.mxu0 0.0
    %173 = vmatpush1.xpose.msra.mxu0 0.0
    %174 = vmatprep.subr.mxu0 0.0
    %175 = vmatpush1.xpose.msra.mxu0 0.0
    %176 = vmatprep.subr.mxu0 0.0
    %177 = vmatpush1.xpose.msra.mxu0 0.0
    %178 = vmatprep.mubr.f32.mxu0 0.0
    %179 = vmatmul.mubr.f32.gmra.mrb[0].mxu0 %v109
    %v180 = vpop.f32.mrb[0].mxu0
    %v181 = vadd.f32 0.0, %v180
    %v182 = vpop.f32.mrb[0].mxu0
    %183 = vdwg.mxu0
    %v184 = vsel %vm108, %v107, 0
    %v187 = vsel %vm108, %v83, 0
    %189 = vmatprep.subr.mxu0 0.0
    %190 = vmatpush1.xpose.msra.mxu0 %v187
    %191 = vmatprep.subr.mxu0 0.0
    %192 = vmatpush1.xpose.msra.mxu0 0.0
    %193 = vmatprep.subr.mxu0 0.0
    %194 = vmatpush1.xpose.msra.mxu0 0.0
    %195 = vmatprep.subr.mxu0 0.0
    %196 = vmatpush1.xpose.msra.mxu0 0.0
    %197 = vmatprep.subr.mxu0 0.0
    %198 = vmatpush1.xpose.msra.mxu0 0.0
    %199 = vmatprep.subr.mxu0 0.0
    %200 = vmatpush1.xpose.msra.mxu0 0.0
    %201 = vmatprep.subr.mxu0 0.0
    %202 = vmatpush1.xpose.msra.mxu0 0.0
    %203 = vmatprep.subr.mxu0 0.0
    %204 = vmatpush1.xpose.msra.mxu0 0.0
    %205 = vmatprep.subr.mxu0 0.0
    %206 = vmatpush1.xpose.msra.mxu0 0.0
    %207 = vmatprep.subr.mxu0 0.0
    %208 = vmatpush1.xpose.msra.mxu0 0.0
    %209 = vmatprep.subr.mxu0 0.0
    %210 = vmatpush1.xpose.msra.mxu0 0.0
    %211 = vmatprep.subr.mxu0 0.0
    %212 = vmatpush1.xpose.msra.mxu0 0.0
    %213 = vmatprep.subr.mxu0 0.0
    %214 = vmatpush1.xpose.msra.mxu0 0.0
    %215 = vmatprep.subr.mxu0 0.0
    %216 = vmatpush1.xpose.msra.mxu0 0.0
    %217 = vmatprep.subr.mxu0 0.0
    %218 = vmatpush1.xpose.msra.mxu0 0.0
    %219 = vmatprep.subr.mxu0 0.0
    %220 = vmatpush1.xpose.msra.mxu0 0.0
    %221 = vmatprep.subr.mxu0 0.0
    %222 = vmatpush1.xpose.msra.mxu0 0.0
    %223 = vmatprep.subr.mxu0 0.0
    %224 = vmatpush1.xpose.msra.mxu0 0.0
    %225 = vmatprep.subr.mxu0 0.0
    %226 = vmatpush1.xpose.msra.mxu0 0.0
    %227 = vmatprep.subr.mxu0 0.0
    %228 = vmatpush1.xpose.msra.mxu0 0.0
    %229 = vmatprep.subr.mxu0 0.0
    %230 = vmatpush1.xpose.msra.mxu0 0.0
    %231 = vmatprep.subr.mxu0 0.0
    %232 = vmatpush1.xpose.msra.mxu0 0.0
    %233 = vmatprep.subr.mxu0 0.0
    %234 = vmatpush1.xpose.msra.mxu0 0.0
    %235 = vmatprep.subr.mxu0 0.0
    %236 = vmatpush1.xpose.msra.mxu0 0.0
    %237 = vmatprep.subr.mxu0 0.0
    %238 = vmatpush1.xpose.msra.mxu0 0.0
    %239 = vmatprep.subr.mxu0 0.0
    %240 = vmatpush1.xpose.msra.mxu0 0.0
    %241 = vmatprep.subr.mxu0 0.0
    %242 = vmatpush1.xpose.msra.mxu0 0.0
    %243 = vmatprep.subr.mxu0 0.0
    %244 = vmatpush1.xpose.msra.mxu0 0.0
    %245 = vmatprep.subr.mxu0 0.0
    %246 = vmatpush1.xpose.msra.mxu0 0.0
    %247 = vmatprep.subr.mxu0 0.0
    %248 = vmatpush1.xpose.msra.mxu0 0.0
    %249 = vmatprep.subr.mxu0 0.0
    %250 = vmatpush1.xpose.msra.mxu0 0.0
    %251 = vmatprep.subr.mxu0 0.0
    %252 = vmatpush1.xpose.msra.mxu0 0.0
    %253 = vmatprep.mubr.f32.mxu0 0.0
    %254 = vmatmul.mubr.f32.gmra.mrb[0].mxu0 %v184
    %v255 = vpop.f32.mrb[0].mxu0
    %v256 = vadd.f32 0.0, %v255
    %v257 = vpop.f32.mrb[0].mxu0
    %258 = vdwg.mxu0
    %vm259 = vcmask 57344
    %v260 = vsel %vm259, %v181, -inf
    %261 = vmax.xlane.f32.xlu0 %v260
    %v262 = vpop.xlane.xlu0 %261
    %v263 = vsel %vm259, %v256, -inf
    %264 = vmax.xlane.f32.xlu0 %v263
    %v265 = vpop.xlane.xlu0 %264
    %v266 = vsub.f32 %v181, %v262
    %v267 = vsub.f32 %v256, %v265
    %v268 = vmul.f32 %v266, 1.442695
    %v269 = vpow.pop %v268
    %v270 = vmul.f32 %v267, 1.442695
    %v271 = vpow.pop %v270
    %v272 = vsel %vm259, %v269, 0.0
    %273 = vadd.xlane.f32.xlu0 %v272
    %v274 = vpop.xlane.xlu0 %273
    %v275 = vsel %vm259, %v271, 0.0
    %276 = vadd.xlane.f32.xlu0 %v275
    %v277 = vpop.xlane.xlu0 %276
    %v278 = vrcp.pop %v274
    %v279 = vrcp.pop %v277
    %v280 = vmul.f32 %v274, %v278
    %v281 = vmul.f32 %v277, %v279
    %v282 = vsub.f32 2.0, %v280
    %v283 = vsub.f32 2.0, %v281
    %v284 = vmul.f32 %v278, %v282
    %v285 = vmul.f32 %v279, %v283
    %v286 = vmul.f32 %v269, %v284
    %v287 = vmul.f32 %v271, %v285
    %288 = vst.msk [vmem:[#allocation5] sm:$0x1] %vm259, %v286
    %289 = vst.msk [vmem:[#allocation5 + $0x1] sm:$0x1] %vm259, %v287
    // Predicated region
    $region14: #{attn_forward.1} parent=1 // pred_check
      _
    $region15: #{attn_forward.1} parent=1 // pred_check_branch
      %291 = sbr.rel (0) target = $region17
    $region16: #{attn_forward.1} parent=1 // pred_region
      %s293 = ssub.s32 32, 32
      %294 = vsyncadd [#allocation4], %s293
      %s295 = sshll.u32 [#allocation5], 4
      %s296 = int_to_ptr.vmem [resolvable:$true] %s295
      %301 = dma.vmem_to_hbm [thread:$0]  %s296, 32, %s2, [#allocation4], 16, 16, 1
    $region17: #{attn_forward.1} parent=1 // pred_fallthru
      _
    // Predicated region
    $region18: #{attn_forward.1} parent=1 // pred_check
      _
    $region19: #{attn_forward.1} parent=1 // pred_check_branch
      %303 = sbr.rel (0) target = $region21
    $region20: #{attn_forward.1} parent=1 // pred_region
      %304 = dma.done [#allocation4], 32
    $region21: #{attn_forward.1} parent=1 // pred_fallthru
      _
    %305 = vsyncpa [#allocation3], 1
    %306 = vsyncpa [#allocation4], 1

</llo_original>
